<compile_context>
chip_gen: v7x
topology: tpu7x:2x2x1
jax: 0.10.0
libtpu: 0.0.40
codegen_flags: <defaults>
</compile_context>

<pallas_src>
import functools
import math

import jax
import jax.numpy as jnp
from jax.experimental import pallas as pl
from jax.experimental.pallas import tpu as pltpu


# ----------------------------------------------------------------------------- kernel

def _pooled_stats_kernel(x1_ref, x2_ref, out_ref,
                         s1_acc, s2_acc, m1_acc, m2_acc,
                         *, hw, tile_s, blocks_per_core, needs_mask):
    c = pl.program_id(0)                 # spatial-split (megacore) slot
    s = pl.program_id(2)                 # spatial step within this slot
    last = pl.num_programs(2) - 1

    # (dim, tile_s) spatial tile of each input; cast per-tile to f32 (bf16-friendly).
    x1 = x1_ref[0].astype(jnp.float32)
    x2 = x2_ref[0].astype(jnp.float32)

    if needs_mask:
        # Mask positions past H*W (tail block and/or fully-padded split blocks):
        # contribute 0 to the sum and -inf to the max.
        start = (c * blocks_per_core + s) * tile_s
        col = jax.lax.broadcasted_iota(jnp.int32, (1, tile_s), 1) + start
        valid = col < hw                                     # (1, tile_s)
        x1s = jnp.where(valid, x1, 0.0)
        x2s = jnp.where(valid, x2, 0.0)
        x1m = jnp.where(valid, x1, -jnp.inf)
        x2m = jnp.where(valid, x2, -jnp.inf)
    else:
        x1s, x1m = x1, x1
        x2s, x2m = x2, x2

    # keepdims=True keeps the reduce result in its natural dim-on-sublanes layout
    # (dim, 1): the per-step accumulator update is a pure VPU add/max, no relayout.
    psum1 = jnp.sum(x1s, axis=-1, keepdims=True)
    psum2 = jnp.sum(x2s, axis=-1, keepdims=True)
    pmax1 = jnp.max(x1m, axis=-1, keepdims=True)
    pmax2 = jnp.max(x2m, axis=-1, keepdims=True)

    @pl.when(s == 0)
    def _():
        s1_acc[...] = jnp.zeros_like(s1_acc)
        s2_acc[...] = jnp.zeros_like(s2_acc)
        m1_acc[...] = jnp.full_like(m1_acc, -jnp.inf)        # max must start at -inf
        m2_acc[...] = jnp.full_like(m2_acc, -jnp.inf)

    s1_acc[...] = s1_acc[...] + psum1
    s2_acc[...] = s2_acc[...] + psum2
    m1_acc[...] = jnp.maximum(m1_acc[...], pmax1)
    m2_acc[...] = jnp.maximum(m2_acc[...], pmax2)

    # Emit raw [sum1, sum2, max1, max2] (dim, 4) once per (slot, batch); the mean
    # divide, split-combine and MLP run in plain JAX on this tiny array.
    @pl.when(s == last)
    def _():
        out_ref[0, 0, :, 0:1] = s1_acc[...]
        out_ref[0, 0, :, 1:2] = s2_acc[...]
        out_ref[0, 0, :, 2:3] = m1_acc[...]
        out_ref[0, 0, :, 3:4] = m2_acc[...]


# ----------------------------------------------------------------------------- sizing

def _vmem_capacity_bytes():
    """Generation-aware VMEM capacity; conservative (v7x-sized) fallback."""
    try:
        cap = getattr(pltpu.get_tpu_info(), "vmem_capacity_bytes", None)
        if cap:
            return int(cap)
    except Exception:
        pass
    return 64 << 20


def _pick_spatial_tile(hw, dim, itemsize, max_tile_bytes, max_spatial_tile=None):
    """Spatial tile (elements of flattened H*W) for one (1, dim, tile_s) block."""
    cap = (max_tile_bytes // max(1, itemsize * dim)) // 128 * 128
    if max_spatial_tile is not None:
        cap = min(cap, (max_spatial_tile // 128) * 128)
    cap = max(cap, 128)
    if hw <= cap:
        return hw          # single full-extent block ("equal full dim" is always legal)
    return cap             # multiple of 128; the tail block is masked in-kernel


# ----------------------------------------------------------------------------- pallas wrapper

def _pooled_stats(x1f, x2f, *, dim, hw, tile_s, split, bpc, n_blocks, vmem_limit):
    """x1f, x2f: (B, dim, HW). Returns (split, B, dim, 4) f32 raw [sum1,sum2,max1,max2]."""
    B = x1f.shape[0]
    needs_mask = (hw % tile_s != 0) or (split * bpc != n_blocks)

    def x_map(c, b, s):
        blk = c * bpc + s
        if split * bpc != n_blocks:                      # static: padded block range
            blk = jnp.minimum(blk, n_blocks - 1)         # keep the DMA in-bounds
        return (b, 0, blk)

    x_spec = pl.BlockSpec((1, dim, tile_s), x_map)

    kern = functools.partial(_pooled_stats_kernel, hw=hw, tile_s=tile_s,
                             blocks_per_core=bpc, needs_mask=needs_mask)

    return pl.pallas_call(
        kern,
        out_shape=jax.ShapeDtypeStruct((split, B, dim, 4), jnp.float32),
        grid_spec=pltpu.PrefetchScalarGridSpec(
            num_scalar_prefetch=0,
            grid=(split, B, bpc),
            in_specs=[x_spec, x_spec],
            out_specs=pl.BlockSpec((1, 1, dim, 4), lambda c, b, s: (c, b, 0, 0)),
            scratch_shapes=[pltpu.VMEM((dim, 1), jnp.float32)] * 4,
        ),
        compiler_params=pltpu.CompilerParams(
            dimension_semantics=("parallel", "parallel", "arbitrary"),
            vmem_limit_bytes=vmem_limit,
        ),
    )(x1f, x2f)


def channel_weights(x1, x2, params, *, dim, reduction=1,
                    max_spatial_tile=None, spatial_split=1):
    """x1, x2: (B, dim, H, W) (f32 or bf16). Returns (2, B, dim, 1, 1) float32."""
    B, C, H, W = x1.shape
    assert C == dim and x2.shape == x1.shape
    hidden = dim * 4 // reduction
    assert params["w1"].shape == (dim * 4, hidden)
    HW = H * W
    itemsize = jnp.dtype(x1.dtype).itemsize

    # Generation-aware budgets: ~75% of physical VMEM; target ~8 MiB per input tile
    # (2 inputs x 2 pipeline buffers must fit with headroom).
    vmem_budget = _vmem_capacity_bytes() * 3 // 4
    per_input_tile_bytes = min(8 << 20, max(1 << 20, (vmem_budget - (4 << 20)) // 4))

    tile_s = _pick_spatial_tile(HW, dim, itemsize, per_input_tile_bytes, max_spatial_tile)
    n_blocks = pl.cdiv(HW, tile_s)
    split = max(1, min(int(spatial_split), n_blocks))
    bpc = pl.cdiv(n_blocks, split)

    tile_bytes = dim * tile_s * itemsize
    est = 4 * tile_bytes + 16 * dim * 4 + split * B * dim * 16 + (2 << 20)
    vmem_limit = int(min(max(2 * est, 16 << 20), vmem_budget))

    x1f = x1.reshape(B, dim, HW)
    x2f = x2.reshape(B, dim, HW)

    pooled = _pooled_stats(x1f, x2f, dim=dim, hw=HW, tile_s=tile_s,
                           split=split, bpc=bpc, n_blocks=n_blocks,
                           vmem_limit=vmem_limit)              # (split, B, dim, 4)

    # Combine spatial-split partials + MLP epilogue in plain JAX (tiny, O(B*dim^2)).
    sums = jnp.sum(pooled[..., 0:2], axis=0)                   # (B, dim, 2)
    maxs = jnp.max(pooled[..., 2:4], axis=0)                   # (B, dim, 2)
    avg = sums * (1.0 / float(HW))                             # true H*W divisor
    y = jnp.concatenate([avg[..., 0], avg[..., 1],
                         maxs[..., 0], maxs[..., 1]], axis=-1)  # (B, 4*dim)
    h = jnp.maximum(y @ params["w1"] + params["b1"], 0.0)
    o = jax.nn.sigmoid(h @ params["w2"] + params["b2"])        # (B, 2*dim)

    # (B, 2*dim) -> (2, B, dim, 1, 1) matches reshape+permute in the PyTorch forward.
    return o.reshape(B, 2, dim).transpose(1, 0, 2)[:, :, :, None, None]


# ----------------------------------------------------------------------------- params / reference

def init_params(key, dim, reduction=1):
    """Deterministic init; Linear weights stored as (in_features, out_features)."""
    hidden = dim * 4 // reduction
    k1, k2, k3, k4 = jax.random.split(key, 4)
    bound1 = 1.0 / math.sqrt(dim * 4)
    bound2 = 1.0 / math.sqrt(hidden)
    return {
        "w1": jax.random.uniform(k1, (dim * 4, hidden), jnp.float32, -bound1, bound1),
        "b1": jax.random.uniform(k2, (1, hidden), jnp.float32, -bound1, bound1),
        "w2": jax.random.uniform(k3, (hidden, dim * 2), jnp.float32, -bound2, bound2),
        "b2": jax.random.uniform(k4, (1, dim * 2), jnp.float32, -bound2, bound2),
    }


def channel_weights_ref(x1, x2, params, *, dim):
    """Pure-JAX reference (mirrors the PyTorch forward)."""
    B = x1.shape[0]
    x = jnp.concatenate([x1, x2], axis=1)                 # (B, 2*dim, H, W)
    avg = jnp.mean(x, axis=(2, 3))                        # (B, 2*dim)
    mx = jnp.max(x, axis=(2, 3))                          # (B, 2*dim)
    y = jnp.concatenate([avg, mx], axis=1)                # (B, 4*dim)
    h = jnp.maximum(y @ params["w1"] + params["b1"], 0.0)
    o = jax.nn.sigmoid(h @ params["w2"] + params["b2"])
    return o.reshape(B, 2, dim, 1, 1).transpose(1, 0, 2, 3, 4)


# ----------------------------------------------------------------------------- test

if __name__ == "__main__":
    B, dim, H, W = 2, 4, 16, 16
    reduction = 1

    key = jax.random.PRNGKey(0)
    kx1, kx2, kp = jax.random.split(key, 3)
    x1 = jax.random.normal(kx1, (B, dim, H, W), jnp.float32)
    x2 = jax.random.normal(kx2, (B, dim, H, W), jnp.float32)
    params = init_params(kp, dim, reduction)

    cw = jax.jit(channel_weights,
                 static_argnames=("dim", "reduction", "max_spatial_tile", "spatial_split"))
    ref = channel_weights_ref(x1, x2, params, dim=dim)

    # 1) Default tile selection (single spatial block at this size).
    out = jax.block_until_ready(cw(x1, x2, params, dim=dim, reduction=reduction))
    assert out.shape == (2, B, dim, 1, 1), out.shape
    assert jnp.allclose(out, ref, atol=1e-5, rtol=1e-5), "default-tile mismatch"

    # 2) Forced multi-step reduction (two 128-wide spatial tiles per batch element).
    out_t = jax.block_until_ready(cw(x1, x2, params, dim=dim, reduction=reduction,
                                     max_spatial_tile=128))
    assert jnp.allclose(out_t, ref, atol=1e-5, rtol=1e-5), "tiled mismatch"

    # 3) Non-128-divisible spatial extent (H*W = 300) -> masked tail tile.
    x1b = jax.random.normal(jax.random.PRNGKey(1), (B, dim, 15, 20), jnp.float32)
    x2b = jax.random.normal(jax.random.PRNGKey(2), (B, dim, 15, 20), jnp.float32)
    refb = channel_weights_ref(x1b, x2b, params, dim=dim)
    outb = jax.block_until_ready(cw(x1b, x2b, params, dim=dim, reduction=reduction,
                                    max_spatial_tile=128))
    assert jnp.allclose(outb, refb, atol=1e-5, rtol=1e-5), "masked-tail mismatch"

    # 4) Spatial-split path (megacore sharding of the reduction for small B on v7x).
    outs = jax.block_until_ready(cw(x1, x2, params, dim=dim, reduction=reduction,
                                    max_spatial_tile=128, spatial_split=2))
    assert jnp.allclose(outs, ref, atol=1e-5, rtol=1e-5), "spatial-split mismatch"

    # 5) bf16 inputs (halves HBM traffic); loose tolerance vs the f32 reference.
    out_bf = jax.block_until_ready(cw(x1.astype(jnp.bfloat16), x2.astype(jnp.bfloat16),
                                      params, dim=dim, reduction=reduction))
    assert jnp.allclose(out_bf, ref, atol=5e-2), "bf16 mismatch"

    print("KERNEL_OK")
</pallas_src>

<mosaic_0001>
module attributes {stable_mosaic.version = 11 : i64} {
  func.func @_pooled_stats_kernel(%arg0: i32, %arg1: i32, %arg2: i32, %arg3: memref<1x4x256xf32, #tpu.memory_space<vmem>>, %arg4: memref<1x4x256xf32, #tpu.memory_space<vmem>>, %arg5: memref<1x1x4x4xf32, #tpu.memory_space<vmem>>, %arg6: memref<4x1xf32, #tpu.memory_space<vmem>>, %arg7: memref<4x1xf32, #tpu.memory_space<vmem>>, %arg8: memref<4x1xf32, #tpu.memory_space<vmem>>, %arg9: memref<4x1xf32, #tpu.memory_space<vmem>>) attributes {dimension_semantics = [#tpu.dimension_semantics<parallel>, #tpu.dimension_semantics<parallel>, #tpu.dimension_semantics<arbitrary>], iteration_bounds = array<i64: 1, 2, 1>, scalar_prefetch = 0 : i64, scratch_operands = 4 : i64, tpu.core_type = #tpu.core_type<tc>, window_params = [{transform_indices = @transform_0, window_bounds = array<i64: 1, 4, 256>}, {transform_indices = @transform_1, window_bounds = array<i64: 1, 4, 256>}, {transform_indices = @transform_2, window_bounds = array<i64: 1, 1, 4, 4>}]} {
    %c0 = arith.constant 0 : index
    %c0_0 = arith.constant 0 : index
    %c0_1 = arith.constant 0 : index
    %0 = vector.load %arg3[%c0, %c0_0, %c0_1] : memref<1x4x256xf32, #tpu.memory_space<vmem>>, vector<1x4x256xf32>
    %1 = vector.shape_cast %0 : vector<1x4x256xf32> to vector<4x256xf32>
    %c0_2 = arith.constant 0 : index
    %c0_3 = arith.constant 0 : index
    %c0_4 = arith.constant 0 : index
    %2 = vector.load %arg4[%c0_2, %c0_3, %c0_4] : memref<1x4x256xf32, #tpu.memory_space<vmem>>, vector<1x4x256xf32>
    %3 = vector.shape_cast %2 : vector<1x4x256xf32> to vector<4x256xf32>
    %cst = arith.constant dense<0.000000e+00> : vector<4xf32>
    %4 = vector.multi_reduction <add>, %1, %cst [1] : vector<4x256xf32> to vector<4xf32>
    %5 = vector.shape_cast %4 : vector<4xf32> to vector<4x1xf32>
    %cst_5 = arith.constant dense<0.000000e+00> : vector<4xf32>
    %6 = vector.multi_reduction <add>, %3, %cst_5 [1] : vector<4x256xf32> to vector<4xf32>
    %7 = vector.shape_cast %6 : vector<4xf32> to vector<4x1xf32>
    %cst_6 = arith.constant dense<0xFF800000> : vector<4xf32>
    %8 = vector.multi_reduction <maximumf>, %1, %cst_6 [1] : vector<4x256xf32> to vector<4xf32>
    %9 = vector.shape_cast %8 : vector<4xf32> to vector<4x1xf32>
    %cst_7 = arith.constant dense<0xFF800000> : vector<4xf32>
    %10 = vector.multi_reduction <maximumf>, %3, %cst_7 [1] : vector<4x256xf32> to vector<4xf32>
    %11 = vector.shape_cast %10 : vector<4xf32> to vector<4x1xf32>
    %c0_i32 = arith.constant 0 : i32
    %12 = arith.cmpi eq, %arg2, %c0_i32 : i32
    %13 = arith.extui %12 : i1 to i32
    %c0_i32_8 = arith.constant 0 : i32
    %14 = arith.cmpi ne, %13, %c0_i32_8 : i32
    scf.if %14 {
      %cst_27 = arith.constant 0.000000e+00 : f32
      %30 = vector.broadcast %cst_27 : f32 to vector<4x1xf32>
      %c0_28 = arith.constant 0 : index
      %c0_29 = arith.constant 0 : index
      %31 = vector.load %arg6[%c0_28, %c0_29] : memref<4x1xf32, #tpu.memory_space<vmem>>, vector<4x1xf32>
      tpu.vector_store %arg6[%c0_28, %c0_29], %30 {strides = array<i32>} : memref<4x1xf32, #tpu.memory_space<vmem>>, vector<4x1xf32>,
      %cst_30 = arith.constant 0.000000e+00 : f32
      %32 = vector.broadcast %cst_30 : f32 to vector<4x1xf32>
      %c0_31 = arith.constant 0 : index
      %c0_32 = arith.constant 0 : index
      %33 = vector.load %arg7[%c0_31, %c0_32] : memref<4x1xf32, #tpu.memory_space<vmem>>, vector<4x1xf32>
      tpu.vector_store %arg7[%c0_31, %c0_32], %32 {strides = array<i32>} : memref<4x1xf32, #tpu.memory_space<vmem>>, vector<4x1xf32>,
      %cst_33 = arith.constant 0xFF800000 : f32
      %34 = vector.broadcast %cst_33 : f32 to vector<4x1xf32>
      %c0_34 = arith.constant 0 : index
      %c0_35 = arith.constant 0 : index
      %35 = vector.load %arg8[%c0_34, %c0_35] : memref<4x1xf32, #tpu.memory_space<vmem>>, vector<4x1xf32>
      tpu.vector_store %arg8[%c0_34, %c0_35], %34 {strides = array<i32>} : memref<4x1xf32, #tpu.memory_space<vmem>>, vector<4x1xf32>,
      %cst_36 = arith.constant 0xFF800000 : f32
      %36 = vector.broadcast %cst_36 : f32 to vector<4x1xf32>
      %c0_37 = arith.constant 0 : index
      %c0_38 = arith.constant 0 : index
      %37 = vector.load %arg9[%c0_37, %c0_38] : memref<4x1xf32, #tpu.memory_space<vmem>>, vector<4x1xf32>
      tpu.vector_store %arg9[%c0_37, %c0_38], %36 {strides = array<i32>} : memref<4x1xf32, #tpu.memory_space<vmem>>, vector<4x1xf32>,
    } else {
    }
    %c0_9 = arith.constant 0 : index
    %c0_10 = arith.constant 0 : index
    %15 = vector.load %arg6[%c0_9, %c0_10] : memref<4x1xf32, #tpu.memory_space<vmem>>, vector<4x1xf32>
    %16 = arith.addf %15, %5 : vector<4x1xf32>
    %c0_11 = arith.constant 0 : index
    %c0_12 = arith.constant 0 : index
    %17 = vector.load %arg6[%c0_11, %c0_12] : memref<4x1xf32, #tpu.memory_space<vmem>>, vector<4x1xf32>
    tpu.vector_store %arg6[%c0_11, %c0_12], %16 {strides = array<i32>} : memref<4x1xf32, #tpu.memory_space<vmem>>, vector<4x1xf32>,
    %c0_13 = arith.constant 0 : index
    %c0_14 = arith.constant 0 : index
    %18 = vector.load %arg7[%c0_13, %c0_14] : memref<4x1xf32, #tpu.memory_space<vmem>>, vector<4x1xf32>
    %19 = arith.addf %18, %7 : vector<4x1xf32>
    %c0_15 = arith.constant 0 : index
    %c0_16 = arith.constant 0 : index
    %20 = vector.load %arg7[%c0_15, %c0_16] : memref<4x1xf32, #tpu.memory_space<vmem>>, vector<4x1xf32>
    tpu.vector_store %arg7[%c0_15, %c0_16], %19 {strides = array<i32>} : memref<4x1xf32, #tpu.memory_space<vmem>>, vector<4x1xf32>,
    %c0_17 = arith.constant 0 : index
    %c0_18 = arith.constant 0 : index
    %21 = vector.load %arg8[%c0_17, %c0_18] : memref<4x1xf32, #tpu.memory_space<vmem>>, vector<4x1xf32>
    %22 = arith.maximumf %21, %9 : vector<4x1xf32>
    %c0_19 = arith.constant 0 : index
    %c0_20 = arith.constant 0 : index
    %23 = vector.load %arg8[%c0_19, %c0_20] : memref<4x1xf32, #tpu.memory_space<vmem>>, vector<4x1xf32>
    tpu.vector_store %arg8[%c0_19, %c0_20], %22 {strides = array<i32>} : memref<4x1xf32, #tpu.memory_space<vmem>>, vector<4x1xf32>,
    %c0_21 = arith.constant 0 : index
    %c0_22 = arith.constant 0 : index
    %24 = vector.load %arg9[%c0_21, %c0_22] : memref<4x1xf32, #tpu.memory_space<vmem>>, vector<4x1xf32>
    %25 = arith.maximumf %24, %11 : vector<4x1xf32>
    %c0_23 = arith.constant 0 : index
    %c0_24 = arith.constant 0 : index
    %26 = vector.load %arg9[%c0_23, %c0_24] : memref<4x1xf32, #tpu.memory_space<vmem>>, vector<4x1xf32>
    tpu.vector_store %arg9[%c0_23, %c0_24], %25 {strides = array<i32>} : memref<4x1xf32, #tpu.memory_space<vmem>>, vector<4x1xf32>,
    %c0_i32_25 = arith.constant 0 : i32
    %27 = arith.cmpi eq, %arg2, %c0_i32_25 : i32
    %28 = arith.extui %27 : i1 to i32
    %c0_i32_26 = arith.constant 0 : i32
    %29 = arith.cmpi ne, %28, %c0_i32_26 : i32
    scf.if %29 {
      %c0_27 = arith.constant 0 : index
      %c0_28 = arith.constant 0 : index
      %30 = vector.load %arg6[%c0_27, %c0_28] : memref<4x1xf32, #tpu.memory_space<vmem>>, vector<4x1xf32>
      %c0_29 = arith.constant 0 : index
      %c0_30 = arith.constant 0 : index
      %c0_31 = arith.constant 0 : index
      %c0_32 = arith.constant 0 : index
      %31 = vector.load %arg5[%c0_29, %c0_30, %c0_31, %c0_32] : memref<1x1x4x4xf32, #tpu.memory_space<vmem>>, vector<1x1x4x1xf32>
      %32 = vector.shape_cast %31 : vector<1x1x4x1xf32> to vector<4x1xf32>
      %33 = vector.shape_cast %30 : vector<4x1xf32> to vector<1x1x4x1xf32>
      tpu.vector_store %arg5[%c0_29, %c0_30, %c0_31, %c0_32], %33 {strides = array<i32>} : memref<1x1x4x4xf32, #tpu.memory_space<vmem>>, vector<1x1x4x1xf32>,
      %c0_33 = arith.constant 0 : index
      %c0_34 = arith.constant 0 : index
      %34 = vector.load %arg7[%c0_33, %c0_34] : memref<4x1xf32, #tpu.memory_space<vmem>>, vector<4x1xf32>
      %c0_35 = arith.constant 0 : index
      %c0_36 = arith.constant 0 : index
      %c0_37 = arith.constant 0 : index
      %c1 = arith.constant 1 : index
      %35 = vector.load %arg5[%c0_35, %c0_36, %c0_37, %c1] : memref<1x1x4x4xf32, #tpu.memory_space<vmem>>, vector<1x1x4x1xf32>
      %36 = vector.shape_cast %35 : vector<1x1x4x1xf32> to vector<4x1xf32>
      %37 = vector.shape_cast %34 : vector<4x1xf32> to vector<1x1x4x1xf32>
      tpu.vector_store %arg5[%c0_35, %c0_36, %c0_37, %c1], %37 {strides = array<i32>} : memref<1x1x4x4xf32, #tpu.memory_space<vmem>>, vector<1x1x4x1xf32>,
      %c0_38 = arith.constant 0 : index
      %c0_39 = arith.constant 0 : index
      %38 = vector.load %arg8[%c0_38, %c0_39] : memref<4x1xf32, #tpu.memory_space<vmem>>, vector<4x1xf32>
      %c0_40 = arith.constant 0 : index
      %c0_41 = arith.constant 0 : index
      %c0_42 = arith.constant 0 : index
      %c2 = arith.constant 2 : index
      %39 = vector.load %arg5[%c0_40, %c0_41, %c0_42, %c2] : memref<1x1x4x4xf32, #tpu.memory_space<vmem>>, vector<1x1x4x1xf32>
      %40 = vector.shape_cast %39 : vector<1x1x4x1xf32> to vector<4x1xf32>
      %41 = vector.shape_cast %38 : vector<4x1xf32> to vector<1x1x4x1xf32>
      tpu.vector_store %arg5[%c0_40, %c0_41, %c0_42, %c2], %41 {strides = array<i32>} : memref<1x1x4x4xf32, #tpu.memory_space<vmem>>, vector<1x1x4x1xf32>,
      %c0_43 = arith.constant 0 : index
      %c0_44 = arith.constant 0 : index
      %42 = vector.load %arg9[%c0_43, %c0_44] : memref<4x1xf32, #tpu.memory_space<vmem>>, vector<4x1xf32>
      %c0_45 = arith.constant 0 : index
      %c0_46 = arith.constant 0 : index
      %c0_47 = arith.constant 0 : index
      %c3 = arith.constant 3 : index
      %43 = vector.load %arg5[%c0_45, %c0_46, %c0_47, %c3] : memref<1x1x4x4xf32, #tpu.memory_space<vmem>>, vector<1x1x4x1xf32>
      %44 = vector.shape_cast %43 : vector<1x1x4x1xf32> to vector<4x1xf32>
      %45 = vector.shape_cast %42 : vector<4x1xf32> to vector<1x1x4x1xf32>
      tpu.vector_store %arg5[%c0_45, %c0_46, %c0_47, %c3], %45 {strides = array<i32>} : memref<1x1x4x4xf32, #tpu.memory_space<vmem>>, vector<1x1x4x1xf32>,
    } else {
    }
    return
  }
  func.func @transform_0(%arg0: i32, %arg1: i32, %arg2: i32) -> (i32, i32, i32) {
    %c1_i32 = arith.constant 1 : i32
    %0 = arith.muli %arg0, %c1_i32 : i32
    %1 = arith.addi %0, %arg2 : i32
    %c0_i32 = arith.constant 0 : i32
    %c0_i32_0 = arith.constant 0 : i32
    return %arg1, %c0_i32, %1 : i32, i32, i32
  }
  func.func @transform_1(%arg0: i32, %arg1: i32, %arg2: i32) -> (i32, i32, i32) {
    %c1_i32 = arith.constant 1 : i32
    %0 = arith.muli %arg0, %c1_i32 : i32
    %1 = arith.addi %0, %arg2 : i32
    %c0_i32 = arith.constant 0 : i32
    %c0_i32_0 = arith.constant 0 : i32
    return %arg1, %c0_i32, %1 : i32, i32, i32
  }
  func.func @transform_2(%arg0: i32, %arg1: i32, %arg2: i32) -> (i32, i32, i32, i32) {
    %c0_i32 = arith.constant 0 : i32
    %c0_i32_0 = arith.constant 0 : i32
    %c0_i32_1 = arith.constant 0 : i32
    return %arg0, %arg1, %c0_i32, %c0_i32_0 : i32, i32, i32, i32
  }
}

</mosaic_0001>

<llo_original>
// kernel: channel_weights.1
$region0: #{channel_weights.1}
  #allocation0 [shape = 'u32[]', space=smem, size = 0x4, offset = 0x4, fixed_abs, tag = 'smem constant byte address 0x4 - core index']
  #allocation1 [shape = 'u32[144,128]{1,0:T(1,128)}', space=vmem, size = 0x12000, scoped, tag = 'internal scratch']
  #allocation2 [shape = 'f32[4,1]{1,0:T(4,128)}', space=vmem, size = 0x800, scoped, tag = 'scratch operand']
  #allocation3 [shape = 'f32[4,1]{1,0:T(4,128)}', space=vmem, size = 0x800, scoped, tag = 'scratch operand']
  #allocation4 [shape = 'f32[4,1]{1,0:T(4,128)}', space=vmem, size = 0x800, scoped, tag = 'scratch operand']
  #allocation5 [shape = 'f32[4,1]{1,0:T(4,128)}', space=vmem, size = 0x800, scoped, tag = 'scratch operand']
  %s0 = inlined_call_operand.vmem [shape: f32[2,4,256], index: 0, kind: input, shape index: {}]
  %s1 = inlined_call_operand.vmem [shape: f32[2,4,256], index: 1, kind: input, shape index: {}]
  %s2 = inlined_call_operand.vmem [shape: f32[1,2,4,4], index: 2, kind: output, shape index: {}]
  %s3 = sld [smem:[#allocation0]]
  $region49: #{channel_weights.1} parent=0
    _
  %s5 = ssub.s32 1, %s3
  %s6 = scalar_select 0, %s5, %s3
  loop: start=0, step=1, limit=4
  $region2: #{channel_weights.1} parent=0 // loop_pre_header
    _
  $region3: #{channel_weights.1} parent=0 // loop_header
    %s8 = sphi 0, %s12
    %p9 = scmp.ge.s32.totalorder %s8, 4
    %s15 = sphi 0, %s34
    %s16 = sphi 0, %s30
    %s17 = sphi 0, %s26
    %s18 = sphi 0, %s15
    %s19 = sphi 0, %s16
    %s20 = sphi 0, %s17
    %s21 = sphi 0, %s18
    %s22 = sphi 0, %s19
    %s23 = sphi 0, %s20
    %s41 = sphi 0, %s43
    %s44 = sphi 0, %s41
    %s45 = sphi 0, %s44
    %s61 = sphi 0, %s45
    %s71 = sphi 0, %s73
    %s74 = sphi 0, %s71
    %s75 = sphi 0, %s74
    %s91 = sphi 0, %s75
    %s99 = sphi 0, %s101
    %s102 = sphi 0, %s99
    %s103 = sphi 0, %s102
    %s119 = sphi 0, %s103
  $region4: #{channel_weights.1} parent=0 // loop_header_branch
    %11 = sbr.rel (%p9) target = $region8
  $region5: #{channel_weights.1} parent=0 // loop_body
    %s13 = ssub.s32 %s8, 1
    %s14 = ssub.s32 %s8, 2
    %s24 = sadd.s32 1, %s17
    %p25 = scmp.ge.s32.totalorder %s24, 1
    %s26 = scalar_select %p25, 0, %s24
    %s27 = sadd.s32 1, %s16
    %s28 = scalar_select %p25, %s27, %s16
    %p29 = scmp.ge.s32.totalorder %s28, 2
    %s30 = scalar_select %p29, 0, %s28
    %s31 = sadd.s32 1, %s15
    %s32 = scalar_select %p29, %s31, %s15
    %p33 = scmp.ge.s32.totalorder %s32, 1
    %s34 = scalar_select %p33, 0, %s32
    %s35 = sadd.s32 %s15, %s17
    %s36 = sadd.s32 %s34, %s26
    %s37 = ssub.s32 %s16, %s30
    %s38 = ssub.s32 %s35, %s36
    %s39 = sor.u32 %s37, %s38
    %p40 = scmp.eq.s32.totalorder %s39, 0
    %s42 = sadd.s32 %s41, 1
    %s43 = scalar_select %p40, %s41, %s42
    %p46 = pneg %p40
    %p47 = scmp.eq.s32.totalorder %s8, 1
    %p48 = por %p46, %p47
    %p49 = scmp.ne.s32.totalorder %s41, %s44
    %p50 = scmp.eq.s32.totalorder %s8, 0
    %p51 = por %p49, %p50
    %p52 = scmp.ne.s32.totalorder %s41, %s44
    %p53 = scmp.eq.s32.totalorder %s13, 1
    %p54 = por %p52, %p53
    %p55 = scmp.ne.s32.totalorder %s44, %s45
    %p56 = scmp.eq.s32.totalorder %s13, 0
    %p57 = por %p55, %p56
    %p58 = scmp.ne.s32.totalorder %s44, %s45
    %p59 = scmp.eq.s32.totalorder %s14, 1
    %p60 = por %p58, %p59
    %p62 = scmp.ne.s32.totalorder %s45, %s61
    %p63 = scmp.eq.s32.totalorder %s14, 0
    %p64 = por %p62, %p63
    %s65 = sadd.s32 %s15, %s17
    %s66 = sadd.s32 %s34, %s26
    %s67 = ssub.s32 %s16, %s30
    %s68 = ssub.s32 %s65, %s66
    %s69 = sor.u32 %s67, %s68
    %p70 = scmp.eq.s32.totalorder %s69, 0
    %s72 = sadd.s32 %s71, 1
    %s73 = scalar_select %p70, %s71, %s72
    %p76 = pneg %p70
    %p77 = scmp.eq.s32.totalorder %s8, 1
    %p78 = por %p76, %p77
    %p79 = scmp.ne.s32.totalorder %s71, %s74
    %p80 = scmp.eq.s32.totalorder %s8, 0
    %p81 = por %p79, %p80
    %p82 = scmp.ne.s32.totalorder %s71, %s74
    %p83 = scmp.eq.s32.totalorder %s13, 1
    %p84 = por %p82, %p83
    %p85 = scmp.ne.s32.totalorder %s74, %s75
    %p86 = scmp.eq.s32.totalorder %s13, 0
    %p87 = por %p85, %p86
    %p88 = scmp.ne.s32.totalorder %s74, %s75
    %p89 = scmp.eq.s32.totalorder %s14, 1
    %p90 = por %p88, %p89
    %p92 = scmp.ne.s32.totalorder %s75, %s91
    %p93 = scmp.eq.s32.totalorder %s14, 0
    %p94 = por %p92, %p93
    %s95 = ssub.s32 %s15, %s34
    %s96 = ssub.s32 %s16, %s30
    %s97 = sor.u32 %s95, %s96
    %p98 = scmp.eq.s32.totalorder %s97, 0
    %s100 = sadd.s32 %s99, 1
    %s101 = scalar_select %p98, %s99, %s100
    %p104 = pneg %p98
    %p105 = scmp.eq.s32.totalorder %s8, 1
    %p106 = por %p104, %p105
    %p107 = scmp.ne.s32.totalorder %s99, %s102
    %p108 = scmp.eq.s32.totalorder %s8, 0
    %p109 = por %p107, %p108
    %p110 = scmp.ne.s32.totalorder %s99, %s102
    %p111 = scmp.eq.s32.totalorder %s13, 1
    %p112 = por %p110, %p111
    %p113 = scmp.ne.s32.totalorder %s102, %s103
    %p114 = scmp.eq.s32.totalorder %s13, 0
    %p115 = por %p113, %p114
    %p116 = scmp.ne.s32.totalorder %s102, %s103
    %p117 = scmp.eq.s32.totalorder %s14, 1
    %p118 = por %p116, %p117
    %p120 = scmp.ne.s32.totalorder %s103, %s119
    %p121 = scmp.eq.s32.totalorder %s14, 0
    %p122 = por %p120, %p121
    %p123 = scmp.le.s32.totalorder 1, %s8
    %p124 = scmp.lt.s32.totalorder %s8, 3
    %p125 = pnand %p123, %p124
    %p126 = pneg %p125
    // Predicated region
    $region9: #{channel_weights.1} parent=5 // pred_check
      _
    $region10: #{channel_weights.1} parent=5 // pred_check_branch
      %128 = sbr.rel (%p125) target = $region12
    $region11: #{channel_weights.1} parent=5 // pred_region
      %s129 = ssub.s32 %s8, 1
    $region12: #{channel_weights.1} parent=5 // pred_fallthru
      _
    %p130 = scmp.lt.s32.totalorder %s8, 2
    // Predicated region
    $region13: #{channel_weights.1} parent=5 // pred_check
      %p131 = pneg %p130
    $region14: #{channel_weights.1} parent=5 // pred_check_branch
      %133 = sbr.rel (%p131) target = $region16
    $region15: #{channel_weights.1} parent=5 // pred_region
      // Predicated region
      $region17: #{channel_weights.1} parent=15 // pred_check
        %p134 = pneg %p51
      $region18: #{channel_weights.1} parent=15 // pred_check_branch
        %136 = sbr.rel (%p134) target = $region20
      $region19: #{channel_weights.1} parent=15 // pred_region
        %s137 = sadd.s32 %s15, %s17
        %s138 = smul.u32 2, %s137
        %p139 = scmp.lt.s32.totalorder %s16, 1
        %s140 = scalar_select %p139, %s16, 1
        %p141 = scmp.lt.s32.totalorder %s138, 1
        %s142 = scalar_select %p141, %s138, 1
        %s143 = smul.addr %s140, 2
        %s144 = sadd.s32 %s142, %s143
        %s145 = smul.addr %s144, 4
        %s146 = scalar_lea.vmem %s0, %s145
        %s147 = sadd.s32 %s15, %s17
        %s148 = smul.u32 2, %s147
      $region20: #{channel_weights.1} parent=15 // pred_fallthru
        _
      // Predicated region
      $region21: #{channel_weights.1} parent=15 // pred_check
        %p149 = pneg %p81
      $region22: #{channel_weights.1} parent=15 // pred_check_branch
        %151 = sbr.rel (%p149) target = $region24
      $region23: #{channel_weights.1} parent=15 // pred_region
        %s152 = sadd.s32 %s15, %s17
        %s153 = smul.u32 2, %s152
        %p154 = scmp.lt.s32.totalorder %s16, 1
        %s155 = scalar_select %p154, %s16, 1
        %p156 = scmp.lt.s32.totalorder %s153, 1
        %s157 = scalar_select %p156, %s153, 1
        %s158 = smul.addr %s155, 2
        %s159 = sadd.s32 %s157, %s158
        %s160 = smul.addr %s159, 4
        %s161 = scalar_lea.vmem %s1, %s160
        %s162 = sadd.s32 %s15, %s17
        %s163 = smul.u32 2, %s162
      $region24: #{channel_weights.1} parent=15 // pred_fallthru
        _
    $region16: #{channel_weights.1} parent=5 // pred_fallthru
      _
    %p164 = scmp.le.s32.totalorder 1, %s8
    %p165 = scmp.lt.s32.totalorder %s8, 3
    %p166 = pnand %p164, %p165
    %p167 = pneg %p166
    // Predicated region
    $region25: #{channel_weights.1} parent=5 // pred_check
      _
    $region26: #{channel_weights.1} parent=5 // pred_check_branch
      %169 = sbr.rel (%p166) target = $region28
    $region27: #{channel_weights.1} parent=5 // pred_region
      %s170 = ssub.s32 %s8, 1
      %s171 = sadd.s32 %s18, %s20
      %s172 = smul.u32 2, %s171
      %p173 = scmp.lt.s32.totalorder %s19, 1
      %s174 = scalar_select %p173, %s19, 1
      %p175 = scmp.lt.s32.totalorder %s172, 1
      %s176 = scalar_select %p175, %s172, 1
      %s177 = smul.addr %s174, 2
      %s178 = sadd.s32 %s176, %s177
      %s179 = smul.addr %s178, 4
      %s180 = scalar_lea.vmem %s0, %s179
      %p181 = pneg %p57
      %p182 = pneg %p54
      %s183 = sadd.s32 %s18, %s20
      %s184 = smul.u32 2, %s183
      %p185 = scmp.lt.s32.totalorder %s19, 1
      %s186 = scalar_select %p185, %s19, 1
      %p187 = scmp.lt.s32.totalorder %s184, 1
      %s188 = scalar_select %p187, %s184, 1
      %s189 = smul.addr %s186, 2
      %s190 = sadd.s32 %s188, %s189
      %s191 = smul.addr %s190, 4
      %s192 = scalar_lea.vmem %s1, %s191
      %p193 = pneg %p87
      %p194 = pneg %p84
      %p195 = pneg %p115
      %p196 = pneg %p112
      %p197 = scmp.lt.s32.totalorder %s18, 0
      %s198 = scalar_select %p197, %s18, 0
      %p199 = scmp.lt.s32.totalorder %s19, 1
      %s200 = scalar_select %p199, %s19, 1
      %s201 = smul.addr %s198, 2
      %s202 = sadd.s32 %s200, %s201
      %s203 = smul.addr %s202, 4
      %s204 = scalar_lea.vmem %s2, %s203
      %s205 = sadd.s32 %s18, %s20
      %s206 = smul.u32 2, %s205
      %p207 = scmp.lt.s32.totalorder %s19, 1
      %s208 = scalar_select %p207, %s19, 1
      %p209 = scmp.lt.s32.totalorder %s206, 1
      %s210 = scalar_select %p209, %s206, 1
      %s211 = smul.addr %s208, 2
      %s212 = sadd.s32 %s210, %s211
      %s213 = smul.addr %s212, 4
      %s214 = scalar_lea.vmem %s0, %s213
      %s215 = sadd.s32 %s18, %s20
      %s216 = smul.u32 2, %s215
      %s217 = sadd.s32 %s18, %s20
      %s218 = smul.u32 2, %s217
      %p219 = scmp.lt.s32.totalorder %s19, 1
      %s220 = scalar_select %p219, %s19, 1
      %p221 = scmp.lt.s32.totalorder %s218, 1
      %s222 = scalar_select %p221, %s218, 1
      %s223 = smul.addr %s220, 2
      %s224 = sadd.s32 %s222, %s223
      %s225 = smul.addr %s224, 4
      %s226 = scalar_lea.vmem %s1, %s225
      %s227 = sadd.s32 %s18, %s20
      %s228 = smul.u32 2, %s227
      %p229 = scmp.lt.s32.totalorder %s18, 0
      %s230 = scalar_select %p229, %s18, 0
      %p231 = scmp.lt.s32.totalorder %s19, 1
      %s232 = scalar_select %p231, %s19, 1
      %s233 = smul.addr %s230, 2
      %s234 = sadd.s32 %s232, %s233
      %s235 = smul.addr %s234, 4
      %s236 = scalar_lea.vmem %s2, %s235
      %v237 = vld [vmem:[%s214] sm:$0xff]
      %v238 = vld [vmem:[%s226] sm:$0xff]
      %v240 = vcombine.high %v237, %v237
      %vm242 = vcmask 1043456
      %v243 = vsel %vm242, %v237, 0.0
      %v244 = vsel %vm242, %v240, 0.0
      %v245 = vadd.f32 %v243, %v244
      %246 = vadd.xlane.f32.xlu0 %v245
      %v247 = vpop.xlane.xlu0 %246
      %v249 = vcombine.high %v238, %v238
      %v251 = vsel %vm242, %v238, 0.0
      %v252 = vsel %vm242, %v249, 0.0
      %v253 = vadd.f32 %v251, %v252
      %254 = vadd.xlane.f32.xlu0 %v253
      %v255 = vpop.xlane.xlu0 %254
      %v256 = vsel %vm242, %v237, -inf
      %v257 = vsel %vm242, %v240, -inf
      %v258 = vmax.f32 %v256, %v257
      %259 = vmax.xlane.f32.xlu0 %v258
      %v260 = vpop.xlane.xlu0 %259
      %v261 = vsel %vm242, %v238, -inf
      %v262 = vsel %vm242, %v249, -inf
      %v263 = vmax.f32 %v261, %v262
      %264 = vmax.xlane.f32.xlu0 %v263
      %v265 = vpop.xlane.xlu0 %264
      %p266 = scmp.eq.s32.totalorder %s20, 0
      // Predicated region
      $region29: #{channel_weights.1} parent=27 // pred_check
        %p267 = pneg %p266
      $region30: #{channel_weights.1} parent=27 // pred_check_branch
        %269 = sbr.rel (%p267) target = $region32
      $region31: #{channel_weights.1} parent=27 // pred_region
        %vm270 = vcmask 3072
        %271 = vst.msk [vmem:[#allocation2] sm:$0xf] %vm270, 0.0
        %272 = vst.msk [vmem:[#allocation3] sm:$0xf] %vm270, 0.0
        %273 = vst.msk [vmem:[#allocation4] sm:$0xf] %vm270, -inf
        %274 = vst.msk [vmem:[#allocation5] sm:$0xf] %vm270, -inf
      $region32: #{channel_weights.1} parent=27 // pred_fallthru
        _
      %v275 = vld [vmem:[#allocation2] sm:$0xf]
      %v276 = vadd.f32 %v275, %v247
      %vm277 = vcmask 3072
      %278 = vst.msk [vmem:[#allocation2] sm:$0xf] %vm277, %v276
      %v279 = vld [vmem:[#allocation3] sm:$0xf]
      %v280 = vadd.f32 %v279, %v255
      %281 = vst.msk [vmem:[#allocation3] sm:$0xf] %vm277, %v280
      %v282 = vld [vmem:[#allocation4] sm:$0xf]
      %v283 = vmax.f32 %v282, %v260
      %284 = vst.msk [vmem:[#allocation4] sm:$0xf] %vm277, %v283
      %v285 = vld [vmem:[#allocation5] sm:$0xf]
      %v286 = vmax.f32 %v285, %v265
      %287 = vst.msk [vmem:[#allocation5] sm:$0xf] %vm277, %v286
      // Predicated region
      $region33: #{channel_weights.1} parent=27 // pred_check
        %p288 = pneg %p266
      $region34: #{channel_weights.1} parent=27 // pred_check_branch
        %290 = sbr.rel (%p288) target = $region36
      $region35: #{channel_weights.1} parent=27 // pred_region
        %v291 = vld [vmem:[#allocation2] sm:$0xf]
        %292 = vst.msk [vmem:[%s236] sm:$0xf] %vm277, %v291
        %v293 = vld [vmem:[#allocation3] sm:$0xf]
        %295 = vrot.lane.b32.xlu0 %v293, 1
        %v296 = vpop.permute.xlu0 %295
        %vm298 = vcmask 11272
        %299 = vst.msk [vmem:[%s236] sm:$0xf] %vm298, %v296
        %v300 = vld [vmem:[#allocation4] sm:$0xf]
        %302 = vrot.lane.b32.xlu0 %v300, 2
        %v303 = vpop.permute.xlu0 %302
        %vm305 = vcmask 19472
        %306 = vst.msk [vmem:[%s236] sm:$0xf] %vm305, %v303
        %v307 = vld [vmem:[#allocation5] sm:$0xf]
        %309 = vrot.lane.b32.xlu0 %v307, 3
        %v310 = vpop.permute.xlu0 %309
        %vm312 = vcmask 27672
        %313 = vst.msk [vmem:[%s236] sm:$0xf] %vm312, %v310
      $region36: #{channel_weights.1} parent=27 // pred_fallthru
        _
      %p314 = scmp.lt.s32.totalorder %s18, 0
      %s315 = scalar_select %p314, %s18, 0
      %p316 = scmp.lt.s32.totalorder %s19, 1
      %s317 = scalar_select %p316, %s19, 1
      %s318 = smul.addr %s315, 2
      %s319 = sadd.s32 %s317, %s318
      %s320 = smul.addr %s319, 4
      %s321 = scalar_lea.vmem %s2, %s320
      // Predicated region
      $region37: #{channel_weights.1} parent=27 // pred_check
        %p322 = pneg %p112
      $region38: #{channel_weights.1} parent=27 // pred_check_branch
        %324 = sbr.rel (%p322) target = $region40
      $region39: #{channel_weights.1} parent=27 // pred_region
        _
      $region40: #{channel_weights.1} parent=27 // pred_fallthru
        _
    $region28: #{channel_weights.1} parent=5 // pred_fallthru
      _
    %p325 = scmp.le.s32.totalorder 2, %s8
    // Predicated region
    $region41: #{channel_weights.1} parent=5 // pred_check
      %p326 = pneg %p325
    $region42: #{channel_weights.1} parent=5 // pred_check_branch
      %328 = sbr.rel (%p326) target = $region44
    $region43: #{channel_weights.1} parent=5 // pred_region
      %s329 = ssub.s32 %s8, 2
      // Predicated region
      $region45: #{channel_weights.1} parent=43 // pred_check
        %p330 = pneg %p118
      $region46: #{channel_weights.1} parent=43 // pred_check_branch
        %332 = sbr.rel (%p330) target = $region48
      $region47: #{channel_weights.1} parent=43 // pred_region
        %p333 = scmp.lt.s32.totalorder %s21, 0
        %s334 = scalar_select %p333, %s21, 0
        %p335 = scmp.lt.s32.totalorder %s22, 1
        %s336 = scalar_select %p335, %s22, 1
        %s337 = smul.addr %s334, 2
        %s338 = sadd.s32 %s336, %s337
        %s339 = smul.addr %s338, 4
        %s340 = scalar_lea.vmem %s2, %s339
      $region48: #{channel_weights.1} parent=43 // pred_fallthru
        _
    $region44: #{channel_weights.1} parent=5 // pred_fallthru
      _
  $region6: #{channel_weights.1} parent=0 // loop_footer
    %s12 = sadd.s32 1, %s8
  $region7: #{channel_weights.1} parent=0 // loop_footer_branch
    %7 = sbr.rel target = $region3
  $region8: #{channel_weights.1} parent=0 // loop_exit
    _

</llo_original>
